<compile_context>
chip_gen: v7x
topology: tpu7x:2x2x1
jax: 0.10.0
libtpu: 0.0.40
codegen_flags: <defaults>
</compile_context>

<pallas_src>
import functools
import numpy as np
import jax
import jax.numpy as jnp
from jax.experimental import pallas as pl
from jax.experimental.pallas import tpu as pltpu


def _round_up(x, m):
    return (x + m - 1) // m * m


def _m_tiling(m, max_tile=512):
    """Choose a lane tile (multiple of 128, 256-aligned when large) and padded M."""
    tm = min(max_tile, _round_up(m, 128))
    return tm, _round_up(m, tm)


# ----------------------------------------------------------------------------------
# Pallas kernels
# ----------------------------------------------------------------------------------
def _matmul_bias_kernel(p_ref, w_ref, b_ref, o_ref, *, relu):
    # out (Co_pad, TM): lane-dense along the flattened spatial axis.
    acc = jnp.dot(w_ref[...], p_ref[...], preferred_element_type=jnp.float32)
    out = acc + b_ref[...]
    if relu:
        out = jnp.maximum(out, 0.0)
    o_ref[...] = out


def _matmul_bias_res_kernel(p_ref, w_ref, b_ref, r_ref, o_ref, *, relu):
    # Same as above with a fused residual add (+ optional ReLU) in the epilogue.
    acc = jnp.dot(w_ref[...], p_ref[...], preferred_element_type=jnp.float32)
    out = acc + b_ref[...] + r_ref[...]
    if relu:
        out = jnp.maximum(out, 0.0)
    o_ref[...] = out


def fused_conv_matmul(p_bf16, w_bf16, bias_f32, tm, residual=None, relu=False):
    """out = relu?( W @ P + bias (+ residual) ).

    p_bf16:   (K_pad, Mp)   bf16  (im2col patches, transposed; Mp % tm == 0)
    w_bf16:   (Co_pad, K_pad) bf16 (BN-folded, pre-padded at init)
    bias_f32: (Co_pad, 1)   f32
    residual: (Co_pad, Mp)  f32 or None
    returns   (Co_pad, Mp)  f32
    """
    kp, mp = p_bf16.shape
    cop = w_bf16.shape[0]
    assert mp % tm == 0
    in_specs = [
        pl.BlockSpec((kp, tm), lambda i: (0, i)),      # patches: tiled along M
        pl.BlockSpec((cop, kp), lambda i: (0, 0)),     # weights: grid-invariant
        pl.BlockSpec((cop, 1), lambda i: (0, 0)),      # bias
    ]
    args = [p_bf16, w_bf16, bias_f32]
    if residual is not None:
        in_specs.append(pl.BlockSpec((cop, tm), lambda i: (0, i)))
        args.append(residual)
        kern = functools.partial(_matmul_bias_res_kernel, relu=relu)
    else:
        kern = functools.partial(_matmul_bias_kernel, relu=relu)
    return pl.pallas_call(
        kern,
        out_shape=jax.ShapeDtypeStruct((cop, mp), jnp.float32),
        grid=(mp // tm,),
        in_specs=in_specs,
        out_specs=pl.BlockSpec((cop, tm), lambda i: (0, i)),
        compiler_params=pltpu.CompilerParams(dimension_semantics=("parallel",)),
    )(*args)


def _add_kernel(a_ref, b_ref, o_ref, *, relu):
    out = a_ref[...] + b_ref[...]
    if relu:
        out = jnp.maximum(out, 0.0)
    o_ref[...] = out


def pallas_add(a, b, relu=False):
    """Elementwise add (+ optional ReLU) on (C, N, H, W) feature maps.
    Flattened to (C, M) so the large M axis is lane-dense and tiled/parallel."""
    shape = a.shape
    c = shape[0]
    m = int(np.prod(shape[1:]))
    a2 = a.reshape(c, m).astype(jnp.float32)
    b2 = b.reshape(c, m).astype(jnp.float32)
    cp = _round_up(c, 8)
    tm, mp = _m_tiling(m, max_tile=1024)
    ap = jnp.pad(a2, ((0, cp - c), (0, mp - m)))
    bp = jnp.pad(b2, ((0, cp - c), (0, mp - m)))
    out = pl.pallas_call(
        functools.partial(_add_kernel, relu=relu),
        out_shape=jax.ShapeDtypeStruct((cp, mp), jnp.float32),
        grid=(mp // tm,),
        in_specs=[pl.BlockSpec((cp, tm), lambda i: (0, i)),
                  pl.BlockSpec((cp, tm), lambda i: (0, i))],
        out_specs=pl.BlockSpec((cp, tm), lambda i: (0, i)),
        compiler_params=pltpu.CompilerParams(dimension_semantics=("parallel",)),
    )(ap, bp)
    return out[:c, :m].reshape(shape)


_UPSAMPLE_TB = 8


def _upsample2x_kernel(x_ref, uh_ref, uw_ref, o_ref, *, tb):
    # Both separable bilinear passes applied fully in VMEM per (c, n) slice.
    uh = uh_ref[...]                                         # (2H, H)
    uw = uw_ref[...]                                         # (W, 2W)
    for bidx in range(tb):
        t = jnp.dot(x_ref[bidx], uw, preferred_element_type=jnp.float32)   # (H, 2W)
        o_ref[bidx] = jnp.dot(uh, t, preferred_element_type=jnp.float32)   # (2H, 2W)


def _bilinear_matrix_2x(n_in):
    """PyTorch F.interpolate(scale_factor=2, mode='bilinear', align_corners=False)
    as a (2*n_in, n_in) 1-D interpolation matrix."""
    n_out = 2 * n_in
    u = np.zeros((n_out, n_in), np.float32)
    for o in range(n_out):
        src = (o + 0.5) / 2.0 - 0.5
        i0 = int(np.floor(src))
        frac = src - i0
        lo = min(max(i0, 0), n_in - 1)
        hi = min(max(i0 + 1, 0), n_in - 1)
        u[o, lo] += 1.0 - frac
        u[o, hi] += frac
    return u


def bilinear_upsample2x(x):
    """x: (C, N, H, W) -> (C, N, 2H, 2W).  Single pallas_call; no HBM transposes,
    no identity affine passes, interpolation matrices stay resident in VMEM."""
    c, n, h, w = x.shape
    uh = jnp.asarray(_bilinear_matrix_2x(h))                 # (2H, H)
    uwt = jnp.asarray(_bilinear_matrix_2x(w).T)              # (W, 2W)
    r = c * n
    tb = _UPSAMPLE_TB
    rp = _round_up(r, tb)
    xr = jnp.pad(x.reshape(r, h, w).astype(jnp.float32), ((0, rp - r), (0, 0), (0, 0)))
    out = pl.pallas_call(
        functools.partial(_upsample2x_kernel, tb=tb),
        out_shape=jax.ShapeDtypeStruct((rp, 2 * h, 2 * w), jnp.float32),
        grid=(rp // tb,),
        in_specs=[pl.BlockSpec((tb, h, w), lambda i: (i, 0, 0)),
                  pl.BlockSpec((2 * h, h), lambda i: (0, 0)),
                  pl.BlockSpec((w, 2 * w), lambda i: (0, 0))],
        out_specs=pl.BlockSpec((tb, 2 * h, 2 * w), lambda i: (i, 0, 0)),
        compiler_params=pltpu.CompilerParams(dimension_semantics=("parallel",)),
    )(xr, uh, uwt)
    return out[:r].reshape(c, n, 2 * h, 2 * w)


# ----------------------------------------------------------------------------------
# Pure-JAX glue: transposed im2col and folded weight-matrix construction
# ----------------------------------------------------------------------------------
def im2col_t(x, k, stride, pad):
    """x: (C, N, H, W) -> patches^T (k*k*C, N*Ho*Wo).  Rows are tap-major,
    channel-minor; columns (flattened output spatial) map onto lanes."""
    c, n, h, w = x.shape
    xp = jnp.pad(x, ((0, 0), (0, 0), (pad, pad), (pad, pad)))
    ho = (h + 2 * pad - k) // stride + 1
    wo = (w + 2 * pad - k) // stride + 1
    taps = []
    for i in range(k):
        for j in range(k):
            taps.append(xp[:, :, i:i + stride * (ho - 1) + 1:stride,
                           j:j + stride * (wo - 1) + 1:stride])
    p = jnp.stack(taps, axis=0)                              # (k*k, C, N, Ho, Wo)
    return p.reshape(k * k * c, n * ho * wo), (n, ho, wo)
    # TODO(synk): for large feature maps a fully in-kernel tap accumulation with
    # halo DMA would avoid the ~k*k x HBM inflation of this im2col glue.


def _conv_weight_matrix_t(w, cin, groups, col_scale):
    """Torch conv weight (cout, cin//groups, kh, kw) -> dense (cout, kh*kw*cin)
    matrix (block-diagonal group structure), rows pre-scaled by folded BN scale.
    Matches im2col_t row order."""
    w = np.asarray(w)
    cout, ipg, kh, kw = w.shape
    opg = cout // groups
    mat = np.zeros((cout, kh * kw * cin), np.float32)
    for g in range(groups):
        for ti in range(kh):
            for tj in range(kw):
                t = ti * kw + tj
                c0 = t * cin + g * ipg
                mat[g * opg:(g + 1) * opg, c0:c0 + ipg] = w[g * opg:(g + 1) * opg, :, ti, tj]
    return mat * np.asarray(col_scale)[:, None]
    # TODO(synk): grouped convs are densified (block-diagonal); at large channel
    # counts a per-group / depthwise-style kernel would avoid the zero-block MXU work.


# ----------------------------------------------------------------------------------
# Deterministic parameter factory
# ----------------------------------------------------------------------------------
class Rng:
    def __init__(self, seed=0):
        self.key = jax.random.PRNGKey(seed)

    def next(self):
        self.key, k = jax.random.split(self.key)
        return k


# ----------------------------------------------------------------------------------
# Modules (forward-only, parameters created deterministically in __init__)
# ----------------------------------------------------------------------------------
class ConvBNAct:
    """ConvModule2d equivalent: Conv2d (optionally grouped) + folded BatchNorm2d
    (eval mode) + optional ReLU, as one fused Pallas matmul.  A following
    residual/qat add (+ optional ReLU) can be fused into the epilogue."""

    def __init__(self, rng, cin, cout, k, stride, pad, groups=1, act=False, use_bias=True):
        self.k, self.stride, self.pad, self.act = k, stride, pad, act
        self.cin, self.cout = cin, cout
        w = 0.1 * jax.random.normal(rng.next(), (cout, cin // groups, k, k), jnp.float32)
        b = (0.01 * jax.random.normal(rng.next(), (cout,), jnp.float32)
             if use_bias else jnp.zeros((cout,), jnp.float32))
        gamma = 1.0 + 0.05 * jax.random.normal(rng.next(), (cout,), jnp.float32)
        beta = 0.02 * jax.random.normal(rng.next(), (cout,), jnp.float32)
        mean = 0.01 * jax.random.normal(rng.next(), (cout,), jnp.float32)
        var = jnp.abs(1.0 + 0.05 * jax.random.normal(rng.next(), (cout,), jnp.float32))
        eps = 1e-5
        bn_s = gamma / jnp.sqrt(var + eps)
        bias = (b - mean) * bn_s + beta                      # folded conv-bias + BN shift
        wmat = _conv_weight_matrix_t(w, cin, groups, bn_s)   # BN scale folded into rows
        kdim = wmat.shape[1]
        self.kp = _round_up(kdim, 16)                        # bf16 sublane packing
        self.cop = _round_up(cout, 8)
        wpad = np.zeros((self.cop, self.kp), np.float32)
        wpad[:cout, :kdim] = wmat
        self.w_bf16 = jnp.asarray(wpad, jnp.bfloat16)        # pre-padded, pre-cast once
        bpad = np.zeros((self.cop, 1), np.float32)
        bpad[:cout, 0] = np.asarray(bias)
        self.bias = jnp.asarray(bpad)

    def __call__(self, x, residual=None, final_relu=None):
        relu = self.act if final_relu is None else final_relu
        p, (n, ho, wo) = im2col_t(x, self.k, self.stride, self.pad)
        kdim, m = p.shape
        tm, mp = _m_tiling(m)
        p = jnp.pad(p, ((0, self.kp - kdim), (0, mp - m))).astype(jnp.bfloat16)
        res = None
        if residual is not None:
            r2 = residual.reshape(self.cout, m).astype(jnp.float32)
            res = jnp.pad(r2, ((0, self.cop - self.cout), (0, mp - m)))
        out = fused_conv_matmul(p, self.w_bf16, self.bias, tm, residual=res, relu=relu)
        return out[:self.cout, :m].reshape(self.cout, n, ho, wo)


class SeparableGroupConv:
    """SeparableGroupConvModule2d equivalent: grouped kxk conv (+BN +dw_act) then
    1x1 pointwise conv (+BN +pw_act); residual/qat add may fuse into the pw epilogue."""

    def __init__(self, rng, cin, cout, groups, k=3, stride=1, pad=1,
                 factor=1.0, dw_act=True, pw_act=False, use_bias=True):
        dw_ch = int(cin * factor)
        self.dw = ConvBNAct(rng, cin, dw_ch, k, stride, pad, groups=groups,
                            act=dw_act, use_bias=use_bias)
        self.pw = ConvBNAct(rng, dw_ch, cout, 1, 1, 0, groups=1,
                            act=pw_act, use_bias=use_bias)

    def __call__(self, x, residual=None, final_relu=None):
        return self.pw(self.dw(x), residual=residual, final_relu=final_relu)


class OnePathResUnit:
    # TODO(synk): exact internals of cap's OnePathResUnit (VarGNet res unit) are not
    # public here; approximated as two separable group convs + separable projection
    # shortcut (identity if is_dim_match), with the residual add fused into the
    # final pointwise conv's epilogue.
    def __init__(self, rng, dw_num_filter, group_base, pw_num_filter, pw_num_filter2,
                 stride, is_dim_match, use_bias, pw_with_act, factor):
        groups_in = dw_num_filter // group_base
        self.is_dim_match = is_dim_match
        if not is_dim_match:
            self.short = SeparableGroupConv(rng, dw_num_filter, pw_num_filter2,
                                            groups=groups_in, k=3, stride=stride, pad=1,
                                            factor=factor, dw_act=True, pw_act=False,
                                            use_bias=use_bias)
        self.conv1 = SeparableGroupConv(rng, dw_num_filter, pw_num_filter,
                                        groups=groups_in, k=3, stride=stride, pad=1,
                                        factor=factor, dw_act=True, pw_act=True,
                                        use_bias=use_bias)
        self.conv2 = SeparableGroupConv(rng, pw_num_filter, pw_num_filter2,
                                        groups=pw_num_filter // group_base, k=3,
                                        stride=1, pad=1, factor=factor, dw_act=True,
                                        pw_act=pw_with_act, use_bias=use_bias)

    def __call__(self, x):
        short = x if self.is_dim_match else self.short(x)
        return self.conv2(self.conv1(x), residual=short)     # fused residual add


class TwoPathResUnit:
    # TODO(synk): approximated — two parallel grouped dw 3x3 branches summed (ReLU),
    # pointwise merge, second separable conv, separable projection shortcut; final
    # residual add fused into conv2's pointwise epilogue.
    def __init__(self, rng, dw_num_filter, group_base, pw_num_filter, pw_num_filter2,
                 stride, is_dim_match, use_bias, pw_with_act, factor):
        groups_in = dw_num_filter // group_base
        dw_ch = int(dw_num_filter * factor)
        self.dw_a = ConvBNAct(rng, dw_num_filter, dw_ch, 3, stride, 1,
                              groups=groups_in, act=True, use_bias=use_bias)
        self.dw_b = ConvBNAct(rng, dw_num_filter, dw_ch, 3, stride, 1,
                              groups=groups_in, act=True, use_bias=use_bias)
        self.pw = ConvBNAct(rng, dw_ch, pw_num_filter, 1, 1, 0, groups=1,
                            act=True, use_bias=use_bias)
        self.conv2 = SeparableGroupConv(rng, pw_num_filter, pw_num_filter2,
                                        groups=pw_num_filter // group_base, k=3,
                                        stride=1, pad=1, factor=factor, dw_act=True,
                                        pw_act=pw_with_act, use_bias=use_bias)
        self.is_dim_match = is_dim_match
        if not is_dim_match:
            self.short = SeparableGroupConv(rng, dw_num_filter, pw_num_filter2,
                                            groups=groups_in, k=3, stride=stride, pad=1,
                                            factor=factor, dw_act=True, pw_act=False,
                                            use_bias=use_bias)

    def __call__(self, x):
        main = pallas_add(self.dw_a(x), self.dw_b(x), relu=True)
        main = self.pw(main)
        short = x if self.is_dim_match else self.short(x)
        return self.conv2(main, residual=short)               # fused residual add


class Upscale:
    def __init__(self, rng, in_c, out_c, gc_group_base, linear_out=True,
                 use_bias=True, factor=2.0):
        self.proj_in = OnePathResUnit(rng, dw_num_filter=in_c, group_base=gc_group_base,
                                      pw_num_filter=in_c, pw_num_filter2=out_c,
                                      stride=1, is_dim_match=False, use_bias=use_bias,
                                      pw_with_act=not linear_out, factor=factor)

    def __call__(self, x):
        return bilinear_upsample2x(self.proj_in(x))


class BottomUpFusion:
    def __init__(self, rng, up_c, bottom_c, out_c, dw_group_base,
                 linear_out=True, use_bias=True, factor=2.0):
        self.upscale = Upscale(rng, up_c, bottom_c, dw_group_base,
                               linear_out=linear_out, use_bias=use_bias, factor=factor)
        self.bottom_proj = OnePathResUnit(rng, dw_num_filter=bottom_c,
                                          group_base=dw_group_base,
                                          pw_num_filter=bottom_c, pw_num_filter2=out_c,
                                          stride=1, is_dim_match=True, use_bias=use_bias,
                                          pw_with_act=not linear_out, factor=factor)
        self.fusion = SeparableGroupConv(rng, int(bottom_c * factor), out_c,
                                         groups=int(bottom_c / dw_group_base), k=3,
                                         stride=1, pad=1, factor=1.0,
                                         dw_act=True, pw_act=False, use_bias=use_bias)

    def __call__(self, up, bottom):
        upscaled = self.upscale(up)
        bottom_out = self.bottom_proj(bottom)
        # qat_add.add + ReLU fused into the fusion block's pointwise-conv epilogue
        return self.fusion(upscaled, residual=bottom_out, final_relu=True)


class UFPN:
    """Unet-FPN neck.  Accepts / returns NCHW; internal compute layout is
    (C, N*H*W): channels on sublanes, flattened spatial on lanes (lane-dense)."""

    def __init__(self, group_base, in_strides, in_channels, out_channels,
                 factor=1.0, output_strides=None, seed=0):
        assert len(in_strides) == len(in_channels) == len(out_channels)
        rng = Rng(seed)
        self.in_strides = list(in_strides)
        self.output_strides = output_strides
        stride2channels = {s: c for s, c in zip(in_strides, out_channels)}
        self.conv1x1 = {}
        self.down_sample = {}
        for i, (s, in_c) in enumerate(zip(in_strides, in_channels)):
            if i != 0:
                self.conv1x1[s] = ConvBNAct(rng, in_c, in_c, 1, 1, 0, groups=1,
                                            act=False, use_bias=True)
            if i != len(in_channels) - 1:
                self.down_sample[s] = TwoPathResUnit(
                    rng, dw_num_filter=in_c, group_base=group_base,
                    pw_num_filter=in_channels[i + 1], pw_num_filter2=in_channels[i + 1],
                    stride=2, is_dim_match=False, use_bias=True,
                    pw_with_act=False, factor=factor)
        self.fusion_blocks = {}
        for s in in_strides[-2::-1]:
            self.fusion_blocks[s] = BottomUpFusion(
                rng, up_c=stride2channels[s * 2], bottom_c=stride2channels[s],
                out_c=stride2channels[s], dw_group_base=group_base,
                linear_out=True, use_bias=True, factor=1.0)

    def __call__(self, xs_nchw):
        # NCHW -> internal (C, N, H, W) once per input
        xs = [jnp.transpose(x, (1, 0, 2, 3)).astype(jnp.float32) for x in xs_nchw]
        down_outputs = [xs[0]]
        for i, s in enumerate(self.in_strides[:-1]):
            cs = self.in_strides[i + 1]
            b = self.down_sample[s](down_outputs[-1])
            # qat_adds.add fused into the 1x1 conv's epilogue
            down_outputs.append(self.conv1x1[cs](xs[i + 1], residual=b))
        up_outputs = [down_outputs[-1]]
        for i, s in enumerate(self.in_strides[-2::-1]):
            up_outputs.append(self.fusion_blocks[s](up_outputs[-1], down_outputs[-i - 2]))
        if not self.output_strides:
            up_outputs = up_outputs[::-1]
        else:
            up_outputs = [up_outputs[::-1][self.in_strides.index(st)]
                          for st in self.output_strides]
        return [jnp.transpose(o, (1, 0, 2, 3)) for o in up_outputs]   # back to NCHW


# ----------------------------------------------------------------------------------
if __name__ == "__main__":
    key = jax.random.PRNGKey(0)
    k0, k1, k2 = jax.random.split(key, 3)
    B = 2
    in_strides = [4, 8, 16]
    in_channels = [4, 8, 16]
    out_channels = [4, 8, 16]
    # PyTorch-convention NCHW inputs
    x0 = jax.random.normal(k0, (B, 4, 16, 16), jnp.float32)
    x1 = jax.random.normal(k1, (B, 8, 8, 8), jnp.float32)
    x2 = jax.random.normal(k2, (B, 16, 4, 4), jnp.float32)

    model = UFPN(group_base=2, in_strides=in_strides, in_channels=in_channels,
                 out_channels=out_channels, factor=1.0, output_strides=None, seed=0)

    outs = model([x0, x1, x2])
    for o in outs:
        jax.block_until_ready(o)

    expected = [(B, 4, 16, 16), (B, 8, 8, 8), (B, 16, 4, 4)]
    assert [tuple(o.shape) for o in outs] == expected, [tuple(o.shape) for o in outs]
    assert all(bool(jnp.isfinite(o).all()) for o in outs)
    print("KERNEL_OK")
</pallas_src>

<mosaic_0001>
module attributes {stable_mosaic.version = 11 : i64} {
  func.func @_matmul_bias_kernel(%arg0: i32, %arg1: memref<48x128xbf16, #tpu.memory_space<vmem>>, %arg2: memref<8x48xbf16, #tpu.memory_space<vmem>>, %arg3: memref<8x1xf32, #tpu.memory_space<vmem>>, %arg4: memref<8x128xf32, #tpu.memory_space<vmem>>) attributes {dimension_semantics = [#tpu.dimension_semantics<parallel>], iteration_bounds = array<i64: 1>, scalar_prefetch = 0 : i64, scratch_operands = 0 : i64, tpu.core_type = #tpu.core_type<tc>, window_params = [{transform_indices = @transform_0, window_bounds = array<i64: 48, 128>}, {pipeline_mode = #tpu.pipeline_mode<synchronous>, transform_indices = @transform_1, window_bounds = array<i64: 8, 48>}, {pipeline_mode = #tpu.pipeline_mode<synchronous>, transform_indices = @transform_2, window_bounds = array<i64: 8, 1>}, {transform_indices = @transform_3, window_bounds = array<i64: 8, 128>}]} {
    %c0 = arith.constant 0 : index
    %c0_0 = arith.constant 0 : index
    %0 = vector.load %arg2[%c0, %c0_0] : memref<8x48xbf16, #tpu.memory_space<vmem>>, vector<8x48xbf16>
    %c0_1 = arith.constant 0 : index
    %c0_2 = arith.constant 0 : index
    %1 = vector.load %arg1[%c0_1, %c0_2] : memref<48x128xbf16, #tpu.memory_space<vmem>>, vector<48x128xbf16>
    %cst = arith.constant dense<0.000000e+00> : vector<8x128xf32>
    %2 = tpu.matmul %0, %1, %cst {dimension_numbers = #tpu.dot_dimension_numbers<[1], [0], [0], [1], [0, 0, 1, 1], [], []>} : vector<8x48xbf16>, vector<48x128xbf16>, vector<8x128xf32> -> vector<8x128xf32>
    %c0_3 = arith.constant 0 : index
    %c0_4 = arith.constant 0 : index
    %3 = vector.load %arg3[%c0_3, %c0_4] : memref<8x1xf32, #tpu.memory_space<vmem>>, vector<8x1xf32>
    %4 = vector.broadcast %3 : vector<8x1xf32> to vector<8x128xf32>
    %5 = arith.addf %2, %4 : vector<8x128xf32>
    %cst_5 = arith.constant 0.000000e+00 : f32
    %6 = vector.broadcast %cst_5 : f32 to vector<8x128xf32>
    %7 = arith.maximumf %5, %6 : vector<8x128xf32>
    %c0_6 = arith.constant 0 : index
    %c0_7 = arith.constant 0 : index
    %8 = vector.load %arg4[%c0_6, %c0_7] : memref<8x128xf32, #tpu.memory_space<vmem>>, vector<8x128xf32>
    tpu.vector_store %arg4[%c0_6, %c0_7], %7 {strides = array<i32>} : memref<8x128xf32, #tpu.memory_space<vmem>>, vector<8x128xf32>,
    return
  }
  func.func @transform_0(%arg0: i32) -> (i32, i32) {
    %c0_i32 = arith.constant 0 : i32
    %c0_i32_0 = arith.constant 0 : i32
    return %c0_i32, %arg0 : i32, i32
  }
  func.func @transform_1(%arg0: i32) -> (i32, i32) {
    %c0_i32 = arith.constant 0 : i32
    %c0_i32_0 = arith.constant 0 : i32
    %c0_i32_1 = arith.constant 0 : i32
    return %c0_i32, %c0_i32_0 : i32, i32
  }
  func.func @transform_2(%arg0: i32) -> (i32, i32) {
    %c0_i32 = arith.constant 0 : i32
    %c0_i32_0 = arith.constant 0 : i32
    %c0_i32_1 = arith.constant 0 : i32
    return %c0_i32, %c0_i32_0 : i32, i32
  }
  func.func @transform_3(%arg0: i32) -> (i32, i32) {
    %c0_i32 = arith.constant 0 : i32
    %c0_i32_0 = arith.constant 0 : i32
    return %c0_i32, %arg0 : i32, i32
  }
}

</mosaic_0001>

<llo_original>
// kernel: tpu_custom_call.1
$region0: #{tpu_custom_call.1}
  #allocation0 [shape = 'u32[]', space=smem, size = 0x4, offset = 0x4, fixed_abs, tag = 'smem constant byte address 0x4 - core index']
  #allocation1 [shape = 'u32[144,128]{1,0:T(1,128)}', space=vmem, size = 0x12000, scoped, tag = 'internal scratch']
  %s0 = inlined_call_operand.hbm [shape: bf16[48,128], index: 0, kind: input, shape index: {}]
  %s1 = inlined_call_operand.vmem [shape: bf16[8,48], index: 1, kind: input, shape index: {}]
  %s2 = inlined_call_operand.vmem [shape: f32[8,1], index: 2, kind: input, shape index: {}]
  %s3 = inlined_call_operand.hbm [shape: f32[8,128], index: 3, kind: output, shape index: {}]
  %s4 = sld [smem:[#allocation0]]
  $region26: #{tpu_custom_call.1} parent=0
    _
  %s6 = ssub.s32 1, %s4
  %s7 = scalar_select 0, %s6, %s4
  $region1: #{tpu_custom_call.1} parent=0
    #allocation2 [shape = 'u8[12288]{0}', space=vmem, size = 0x3000, scoped, tag = 'input window, operand 0, single buffered']
    #allocation3 [shape = 's32[1]{0}', space=sflag, size = 0x4, scoped, tag = 'scoped memory for tpu_custom_call.1']
    #allocation4 [shape = 's32[1]{0}', space=sflag, size = 0x4, scoped, tag = 'scoped memory for tpu_custom_call.1']
    #allocation5 [shape = 'u8[4096]{0}', space=vmem, size = 0x1000, scoped, tag = 'output window, operand 0, single buffered']
    %8 = vsyncpa [#allocation3], 0
    %9 = vsyncpa [#allocation4], 0
    // Predicated region
    $region2: #{tpu_custom_call.1} parent=1 // pred_check
      _
    $region3: #{tpu_custom_call.1} parent=1 // pred_check_branch
      %11 = sbr.rel (0) target = $region5
    $region4: #{tpu_custom_call.1} parent=1 // pred_region
      %s13 = ssub.s32 384, 384
      %14 = vsyncadd [#allocation3], %s13
      %s15 = sshll.u32 [#allocation2], 4
      %s16 = int_to_ptr.vmem [resolvable:$true] %s15
      %21 = dma.hbm_to_vmem [thread:$0]  %s0, 384, %s16, [#allocation3], 64, 64, 4
    $region5: #{tpu_custom_call.1} parent=1 // pred_fallthru
      _
    // Predicated region
    $region6: #{tpu_custom_call.1} parent=1 // pred_check
      _
    $region7: #{tpu_custom_call.1} parent=1 // pred_check_branch
      %23 = sbr.rel (0) target = $region9
    $region8: #{tpu_custom_call.1} parent=1 // pred_region
      _
    $region9: #{tpu_custom_call.1} parent=1 // pred_fallthru
      _
    // Predicated region
    $region10: #{tpu_custom_call.1} parent=1 // pred_check
      _
    $region11: #{tpu_custom_call.1} parent=1 // pred_check_branch
      %25 = sbr.rel (0) target = $region13
    $region12: #{tpu_custom_call.1} parent=1 // pred_region
      _
    $region13: #{tpu_custom_call.1} parent=1 // pred_fallthru
      _
    // Predicated region
    $region14: #{tpu_custom_call.1} parent=1 // pred_check
      _
    $region15: #{tpu_custom_call.1} parent=1 // pred_check_branch
      %27 = sbr.rel (0) target = $region17
    $region16: #{tpu_custom_call.1} parent=1 // pred_region
      %28 = dma.done [#allocation3], 384
    $region17: #{tpu_custom_call.1} parent=1 // pred_fallthru
      _
    %v30 = vld [vmem:[%s1] sm:$0xf]
    %v31 = vld [vmem:[#allocation2] sm:$0xf]
    %v32 = vld [vmem:[#allocation2 + $0x4] sm:$0xf]
    %v33 = vld [vmem:[#allocation2 + $0x8] sm:$0xf]
    %v34 = vld [vmem:[#allocation2 + $0xc] sm:$0xf]
    %v35 = vld [vmem:[#allocation2 + $0x10] sm:$0xf]
    %v36 = vld [vmem:[#allocation2 + $0x14] sm:$0xf]
    %v37 = vld [vmem:[%s2] sm:$0xff]
    %39 = vset.pattern.permute.xlu0 0
    %40 = vperm.xlu0 %39, %v37
    %v41 = vpop.permute.xlu0 %40
    %v49 = vunpack.c.l.b16 %v31
    %v50 = vunpack.c.l.b16 %v32
    %v51 = vunpack.c.l.b16 %v33
    %v52 = vunpack.c.l.b16 %v34
    %v53 = vunpack.c.l.b16 %v35
    %v54 = vunpack.c.l.b16 %v36
    %v55 = vpack.c.b16 %v50, %v49
    %v56 = vpack.c.b16 %v52, %v51
    %v57 = vpack.c.b16 %v54, %v53
    %vm61 = vcmask 392192
    %v63 = vsel %vm61, %v30, 0
    %65 = vmatprep.subr.bf16.mxu0 0
    %66 = vmatpush1.bf16.msra.mxu0 %v55
    %67 = vmatprep.subr.bf16.mxu0 0
    %68 = vmatpush1.bf16.msra.mxu0 %v56
    %69 = vmatprep.subr.bf16.mxu0 0
    %70 = vmatpush1.bf16.msra.mxu0 %v57
    %71 = vmatprep.subr.bf16.mxu0 0
    %72 = vmatpush1.bf16.msra.mxu0 0
    %73 = vmatprep.subr.bf16.mxu0 0
    %74 = vmatpush1.bf16.msra.mxu0 0
    %75 = vmatprep.subr.bf16.mxu0 0
    %76 = vmatpush1.bf16.msra.mxu0 0
    %77 = vmatprep.subr.bf16.mxu0 0
    %78 = vmatpush1.bf16.msra.mxu0 0
    %79 = vmatprep.subr.bf16.mxu0 0
    %80 = vmatpush1.bf16.msra.mxu0 0
    %81 = vmatprep.subr.bf16.mxu0 0
    %82 = vmatpush1.bf16.msra.mxu0 0
    %83 = vmatprep.subr.bf16.mxu0 0
    %84 = vmatpush1.bf16.msra.mxu0 0
    %85 = vmatprep.subr.bf16.mxu0 0
    %86 = vmatpush1.bf16.msra.mxu0 0
    %87 = vmatprep.subr.bf16.mxu0 0
    %88 = vmatpush1.bf16.msra.mxu0 0
    %89 = vmatprep.subr.bf16.mxu0 0
    %90 = vmatpush1.bf16.msra.mxu0 0
    %91 = vmatprep.subr.bf16.mxu0 0
    %92 = vmatpush1.bf16.msra.mxu0 0
    %93 = vmatprep.subr.bf16.mxu0 0
    %94 = vmatpush1.bf16.msra.mxu0 0
    %95 = vmatprep.subr.bf16.mxu0 0
    %96 = vmatpush1.bf16.msra.mxu0 0
    %97 = vmatprep.mubr.bf16.mxu0 0
    %98 = vmatmul.mubr.bf16.gmra.mrb[0].mxu0 %v63
    %v99 = vpop.f32.mrb[0].mxu0
    %v100 = vadd.f32 %v41, %v99
    %v101 = vpop.f32.mrb[0].mxu0
    %v102 = vpop.f32.mrb[0].mxu0
    %v103 = vpop.f32.mrb[0].mxu0
    %104 = vdwg.mxu0
    %v105 = vmax.f32 %v100, 0.0
    %106 = vst [vmem:[#allocation5] sm:$0xff] %v105
    // Predicated region
    $region18: #{tpu_custom_call.1} parent=1 // pred_check
      _
    $region19: #{tpu_custom_call.1} parent=1 // pred_check_branch
      %108 = sbr.rel (0) target = $region21
    $region20: #{tpu_custom_call.1} parent=1 // pred_region
      %s110 = ssub.s32 128, 128
      %111 = vsyncadd [#allocation4], %s110
      %s113 = sshll.u32 [#allocation5], 4
      %s114 = int_to_ptr.vmem [resolvable:$true] %s113
      %116 = dma.vmem_to_hbm [thread:$0]  %s114, 128, %s3, [#allocation4]
    $region21: #{tpu_custom_call.1} parent=1 // pred_fallthru
      _
    // Predicated region
    $region22: #{tpu_custom_call.1} parent=1 // pred_check
      _
    $region23: #{tpu_custom_call.1} parent=1 // pred_check_branch
      %118 = sbr.rel (0) target = $region25
    $region24: #{tpu_custom_call.1} parent=1 // pred_region
      %119 = dma.done [#allocation4], 128
    $region25: #{tpu_custom_call.1} parent=1 // pred_fallthru
      _
    %120 = vsyncpa [#allocation3], 1
    %121 = vsyncpa [#allocation4], 1

</llo_original>
